<compile_context>
chip_gen: v6e
topology: v6e:2x2x1
jax: 0.10.0
libtpu: 0.0.40
codegen_flags: <defaults>
</compile_context>

<pallas_src>
import jax
import jax.numpy as jnp
from jax.experimental import pallas as pl
from jax.experimental.pallas import tpu as pltpu


# --------------------------------------------------------------------------
# Kernels
# --------------------------------------------------------------------------
def _prop_kernel(a_ref, h_ref, out_ref, acc_ref):
    """out[i] = sum_j A[i, j] @ h[j]   (bf16 MXU operands, f32 accumulate)."""
    j = pl.program_id(1)

    @pl.when(j == 0)
    def _():
        acc_ref[...] = jnp.zeros_like(acc_ref)

    acc_ref[...] += jnp.dot(
        a_ref[...], h_ref[...], preferred_element_type=jnp.float32
    )

    @pl.when(j == pl.num_programs(1) - 1)
    def _():
        out_ref[...] = acc_ref[...].astype(out_ref.dtype)


def _prop_bias_kernel(a_ref, h_ref, b_ref, out_ref, acc_ref):
    """Final propagation pass fused with the (already-fused) bias add.

    out[i] = (sum_j A[i, j] @ h[j]) + b_fused,  f32 logits out.
    """
    j = pl.program_id(1)

    @pl.when(j == 0)
    def _():
        acc_ref[...] = jnp.zeros_like(acc_ref)

    acc_ref[...] += jnp.dot(
        a_ref[...], h_ref[...], preferred_element_type=jnp.float32
    )

    @pl.when(j == pl.num_programs(1) - 1)
    def _():
        out_ref[...] = acc_ref[...] + b_ref[...]


# --------------------------------------------------------------------------
# Tiling helpers
# --------------------------------------------------------------------------
def _round_up(x, m):
    return ((x + m - 1) // m) * m


def _divisor_tile(n, preferred, align):
    """Largest t <= preferred with n % t == 0 and t % align == 0, else None."""
    t = (min(preferred, n) // align) * align
    while t >= align:
        if n % t == 0:
            return t
        t -= align
    return None


def _choose_tiles(n, row_tile, col_tile):
    """Pick (n_pad, tm, tn).

    tm: 16-aligned row tile (bf16 packs two rows per sublane),
    tn: 128-aligned contraction tile.
    If N has no aligned divisor, pad N with zero rows/cols so aligned tiles
    divide it exactly (keeps the A block bounded on v7x's 64 MiB VMEM).
    """
    tm = n if n <= row_tile else _divisor_tile(n, row_tile, 16)
    tn = n if n <= col_tile else _divisor_tile(n, col_tile, 128)
    if tm is not None and tn is not None:
        return n, tm, tn
    n_pad = _round_up(n, 256)
    tm = _divisor_tile(n_pad, max(row_tile, 256), 16)
    tn = _divisor_tile(n_pad, max(col_tile, 256), 128)
    return n_pad, tm, tn


# --------------------------------------------------------------------------
# Wrapper
# --------------------------------------------------------------------------
def sgc_forward(a_hat, x, w_sg, b_sg, w_head, b_head, *, k=2,
                row_tile=512, col_tile=2048):
    """logits = A_hat^k @ X @ W_sg @ W_head + (b_sg @ W_head + b_head).

    Pass `a_hat` already in bf16 (cast once at setup) to avoid an extra
    O(N^2) HBM pass; an f32 adjacency is cast defensively here.
    """
    n, _ = x.shape
    c = w_head.shape[1]

    # Fuse SGConv fc and the head Linear into one (F, C) projection.
    w_fused = (w_sg @ w_head).astype(jnp.float32)              # (F, C)
    b_fused = (b_sg @ w_head + b_head).astype(jnp.float32)     # (1, C)

    # Project BEFORE propagating: tiny XLA matmul, then the kernel only ever
    # streams the narrow (N, C) matrix alongside A.
    h = x.astype(jnp.float32) @ w_fused                        # (N, C) f32

    if k <= 0:
        # A^0 = I: pure projection, no propagation kernel needed.
        return h + b_fused

    a_bf16 = a_hat if a_hat.dtype == jnp.bfloat16 else a_hat.astype(jnp.bfloat16)

    n_pad, tm, tn = _choose_tiles(n, row_tile, col_tile)
    if n_pad != n:
        # Zero rows/cols contribute nothing; padded output rows are sliced off.
        a_bf16 = jnp.pad(a_bf16, ((0, n_pad - n), (0, n_pad - n)))
        h = jnp.pad(h, ((0, n_pad - n), (0, 0)))

    # bf16 intermediates between passes: halves h traffic, feeds the MXU its
    # native operand, no per-step cast in the kernel.
    h = h.astype(jnp.bfloat16)

    grid = (n_pad // tm, n_pad // tn)

    cp = pltpu.CompilerParams(
        dimension_semantics=("parallel", "arbitrary"),
        vmem_limit_bytes=48 * 1024 * 1024,   # v7x-safe (64 MiB physical)
    )

    a_spec = pl.BlockSpec((tm, tn), lambda i, j: (i, j))       # A tile (streamed)
    h_spec = pl.BlockSpec((tn, c), lambda i, j: (j, 0))        # narrow h tile
    out_spec = pl.BlockSpec((tm, c), lambda i, j: (i, 0))

    prop = pl.pallas_call(
        _prop_kernel,
        out_shape=jax.ShapeDtypeStruct((n_pad, c), jnp.bfloat16),
        grid_spec=pltpu.PrefetchScalarGridSpec(
            num_scalar_prefetch=0,
            grid=grid,
            in_specs=[a_spec, h_spec],
            out_specs=out_spec,
            scratch_shapes=[pltpu.VMEM((tm, c), jnp.float32)],
        ),
        compiler_params=cp,
    )

    final = pl.pallas_call(
        _prop_bias_kernel,
        out_shape=jax.ShapeDtypeStruct((n_pad, c), jnp.float32),
        grid_spec=pltpu.PrefetchScalarGridSpec(
            num_scalar_prefetch=0,
            grid=grid,
            in_specs=[
                a_spec,
                h_spec,
                pl.BlockSpec((1, c), lambda i, j: (0, 0)),     # fused bias (resident)
            ],
            out_specs=out_spec,
            scratch_shapes=[pltpu.VMEM((tm, c), jnp.float32)],
        ),
        compiler_params=cp,
    )

    for _ in range(k - 1):                    # k-1 propagation-only passes
        h = prop(a_bf16, h)
    logits = final(a_bf16, h, b_fused)        # last pass fused with bias add

    return logits[:n] if n_pad != n else logits


# --------------------------------------------------------------------------
# Helpers / demo
# --------------------------------------------------------------------------
def build_normalized_adjacency(key, n):
    """Random undirected graph -> A_hat = D^{-1/2} (A + I) D^{-1/2}."""
    bits = jax.random.bernoulli(key, p=0.3, shape=(n, n)).astype(jnp.float32)
    a = jnp.maximum(bits, bits.T)                      # symmetric
    a = a + jnp.eye(n, dtype=jnp.float32)              # self-loops
    a = jnp.minimum(a, 1.0)
    deg = jnp.sum(a, axis=1)
    d_inv_sqrt = 1.0 / jnp.sqrt(deg)
    return a * d_inv_sqrt[:, None] * d_inv_sqrt[None, :]


if __name__ == "__main__":
    # Small, module-consistent shapes.
    N = 16          # number of graph nodes
    IN_FEATS = 8    # in_feats
    N_HIDDEN = 32   # n_hidden
    N_CLASSES = 4   # n_classes
    K = 2           # propagation steps

    key = jax.random.PRNGKey(0)
    k_adj, k_x, k_wsg, k_bsg, k_wh, k_bh = jax.random.split(key, 6)

    a_hat = build_normalized_adjacency(k_adj, N)
    # Store the adjacency in bf16 ONCE at setup (not per forward call).
    a_hat_bf16 = a_hat.astype(jnp.bfloat16)

    x = jax.random.normal(k_x, (N, IN_FEATS), dtype=jnp.float32)

    # Parameters stored as (in, out) so the kernel does plain row-major matmuls.
    w_sg = jax.random.normal(k_wsg, (IN_FEATS, N_HIDDEN), jnp.float32) * (1.0 / jnp.sqrt(IN_FEATS))
    b_sg = jax.random.normal(k_bsg, (1, N_HIDDEN), jnp.float32) * 0.01
    w_head = jax.random.normal(k_wh, (N_HIDDEN, N_CLASSES), jnp.float32) * (1.0 / jnp.sqrt(N_HIDDEN))
    b_head = jax.random.normal(k_bh, (1, N_CLASSES), jnp.float32) * 0.01

    logits = sgc_forward(a_hat_bf16, x, w_sg, b_sg, w_head, b_head, k=K)
    logits = jax.block_until_ready(logits)

    # Pure-JAX f32 reference (module semantics).  Kernel uses bf16 A and bf16
    # intermediate h, so tolerance is loosened accordingly.
    h_ref = x
    for _ in range(K):
        h_ref = a_hat @ h_ref
    ref = (h_ref @ w_sg + b_sg) @ w_head + b_head

    assert logits.shape == (N, N_CLASSES)
    assert jnp.allclose(logits, ref, atol=3e-2, rtol=3e-2), (
        float(jnp.max(jnp.abs(logits - ref)))
    )

    print("KERNEL_OK")
</pallas_src>

<mosaic_0001>
module attributes {stable_mosaic.version = 11 : i64} {
  func.func @_prop_kernel(%arg0: i32, %arg1: i32, %arg2: memref<16x16xbf16, #tpu.memory_space<vmem>>, %arg3: memref<16x4xbf16, #tpu.memory_space<vmem>>, %arg4: memref<16x4xbf16, #tpu.memory_space<vmem>>, %arg5: memref<16x4xf32, #tpu.memory_space<vmem>>) attributes {dimension_semantics = [#tpu.dimension_semantics<parallel>, #tpu.dimension_semantics<arbitrary>], iteration_bounds = array<i64: 1, 1>, scalar_prefetch = 0 : i64, scratch_operands = 1 : i64, tpu.core_type = #tpu.core_type<tc>, window_params = [{transform_indices = @transform_0, window_bounds = array<i64: 16, 16>}, {transform_indices = @transform_1, window_bounds = array<i64: 16, 4>}, {transform_indices = @transform_2, window_bounds = array<i64: 16, 4>}]} {
    %c0_i32 = arith.constant 0 : i32
    %0 = arith.cmpi eq, %arg1, %c0_i32 : i32
    %1 = arith.extui %0 : i1 to i32
    %c0_i32_0 = arith.constant 0 : i32
    %2 = arith.cmpi ne, %1, %c0_i32_0 : i32
    scf.if %2 {
      %cst_10 = arith.constant 0.000000e+00 : f32
      %12 = vector.broadcast %cst_10 : f32 to vector<16x4xf32>
      %c0_11 = arith.constant 0 : index
      %c0_12 = arith.constant 0 : index
      %13 = vector.load %arg5[%c0_11, %c0_12] : memref<16x4xf32, #tpu.memory_space<vmem>>, vector<16x4xf32>
      tpu.vector_store %arg5[%c0_11, %c0_12], %12 {strides = array<i32>} : memref<16x4xf32, #tpu.memory_space<vmem>>, vector<16x4xf32>,
    } else {
    }
    %c0 = arith.constant 0 : index
    %c0_1 = arith.constant 0 : index
    %3 = vector.load %arg5[%c0, %c0_1] : memref<16x4xf32, #tpu.memory_space<vmem>>, vector<16x4xf32>
    %c0_2 = arith.constant 0 : index
    %c0_3 = arith.constant 0 : index
    %4 = vector.load %arg2[%c0_2, %c0_3] : memref<16x16xbf16, #tpu.memory_space<vmem>>, vector<16x16xbf16>
    %c0_4 = arith.constant 0 : index
    %c0_5 = arith.constant 0 : index
    %5 = vector.load %arg3[%c0_4, %c0_5] : memref<16x4xbf16, #tpu.memory_space<vmem>>, vector<16x4xbf16>
    %cst = arith.constant dense<0.000000e+00> : vector<16x4xf32>
    %6 = tpu.matmul %4, %5, %cst {dimension_numbers = #tpu.dot_dimension_numbers<[1], [0], [0], [1], [0, 0, 1, 1], [], []>} : vector<16x16xbf16>, vector<16x4xbf16>, vector<16x4xf32> -> vector<16x4xf32>
    %7 = arith.addf %3, %6 : vector<16x4xf32>
    %c0_6 = arith.constant 0 : index
    %c0_7 = arith.constant 0 : index
    %8 = vector.load %arg5[%c0_6, %c0_7] : memref<16x4xf32, #tpu.memory_space<vmem>>, vector<16x4xf32>
    tpu.vector_store %arg5[%c0_6, %c0_7], %7 {strides = array<i32>} : memref<16x4xf32, #tpu.memory_space<vmem>>, vector<16x4xf32>,
    %c0_i32_8 = arith.constant 0 : i32
    %9 = arith.cmpi eq, %arg1, %c0_i32_8 : i32
    %10 = arith.extui %9 : i1 to i32
    %c0_i32_9 = arith.constant 0 : i32
    %11 = arith.cmpi ne, %10, %c0_i32_9 : i32
    scf.if %11 {
      %c0_10 = arith.constant 0 : index
      %c0_11 = arith.constant 0 : index
      %12 = vector.load %arg5[%c0_10, %c0_11] : memref<16x4xf32, #tpu.memory_space<vmem>>, vector<16x4xf32>
      %13 = arith.truncf %12 : vector<16x4xf32> to vector<16x4xbf16>
      %c0_12 = arith.constant 0 : index
      %c0_13 = arith.constant 0 : index
      %14 = vector.load %arg4[%c0_12, %c0_13] : memref<16x4xbf16, #tpu.memory_space<vmem>>, vector<16x4xbf16>
      tpu.vector_store %arg4[%c0_12, %c0_13], %13 {strides = array<i32>} : memref<16x4xbf16, #tpu.memory_space<vmem>>, vector<16x4xbf16>,
    } else {
    }
    return
  }
  func.func @transform_0(%arg0: i32, %arg1: i32) -> (i32, i32) {
    %c0_i32 = arith.constant 0 : i32
    return %arg0, %arg1 : i32, i32
  }
  func.func @transform_1(%arg0: i32, %arg1: i32) -> (i32, i32) {
    %c0_i32 = arith.constant 0 : i32
    %c0_i32_0 = arith.constant 0 : i32
    return %arg1, %c0_i32 : i32, i32
  }
  func.func @transform_2(%arg0: i32, %arg1: i32) -> (i32, i32) {
    %c0_i32 = arith.constant 0 : i32
    %c0_i32_0 = arith.constant 0 : i32
    return %arg0, %c0_i32 : i32, i32
  }
}

</mosaic_0001>

<llo_original>
// kernel: tpu_custom_call.1
$region0: #{tpu_custom_call.1}
  #allocation0 [shape = 'u32[]', space=smem, size = 0x4, offset = 0x4, fixed_abs, tag = 'smem constant byte address 0x4 - core index']
  #allocation1 [shape = 'u32[144,128]{1,0:T(1,128)}', space=vmem, size = 0x12000, scoped, tag = 'internal scratch']
  #allocation2 [shape = 'f32[16,4]{1,0:T(8,128)}', space=vmem, size = 0x2000, scoped, tag = 'scratch operand']
  %s0 = inlined_call_operand.vmem [shape: bf16[16,16], index: 0, kind: input, shape index: {}]
  %s1 = inlined_call_operand.vmem [shape: bf16[16,4], index: 1, kind: input, shape index: {}]
  %s2 = inlined_call_operand.vmem [shape: bf16[16,4], index: 2, kind: output, shape index: {}]
  %s3 = sld [smem:[#allocation0]]
  $region26: #{tpu_custom_call.1} parent=0
    _
  %s5 = ssub.s32 1, %s3
  %s6 = scalar_select 0, %s5, %s3
  // Predicated region
  $region2: #{tpu_custom_call.1} parent=0 // pred_check
    _
  $region3: #{tpu_custom_call.1} parent=0 // pred_check_branch
    %8 = sbr.rel (0) target = $region5
  $region4: #{tpu_custom_call.1} parent=0 // pred_region
    _
  $region5: #{tpu_custom_call.1} parent=0 // pred_fallthru
    _
  // Predicated region
  $region6: #{tpu_custom_call.1} parent=0 // pred_check
    _
  $region7: #{tpu_custom_call.1} parent=0 // pred_check_branch
    %10 = sbr.rel (0) target = $region9
  $region8: #{tpu_custom_call.1} parent=0 // pred_region
    _
  $region9: #{tpu_custom_call.1} parent=0 // pred_fallthru
    _
  %p12 = scmp.eq.s32.totalorder 0, 0
  // Predicated region
  $region10: #{tpu_custom_call.1} parent=0 // pred_check
    %p13 = pneg %p12
  $region11: #{tpu_custom_call.1} parent=0 // pred_check_branch
    %15 = sbr.rel (%p13) target = $region13
  $region12: #{tpu_custom_call.1} parent=0 // pred_region
    %vm16 = vcmask 31744
    %17 = vst.msk [vmem:[#allocation2] sm:$0xff] %vm16, 0.0
    %18 = vst.msk [vmem:[#allocation2 + $0x8] sm:$0xff] %vm16, 0.0
  $region13: #{tpu_custom_call.1} parent=0 // pred_fallthru
    _
  %v19 = vld [vmem:[#allocation2] sm:$0xff]
  %v20 = vld [vmem:[#allocation2 + $0x8] sm:$0xff]
  %v21 = vld [vmem:[%s0] sm:$0xf]
  %v22 = vld [vmem:[%s0 + $0x4] sm:$0xf]
  %v23 = vld [vmem:[%s1] sm:$0xf]
  %v24 = vld [vmem:[%s1 + $0x4] sm:$0xf]
  %v27 = vunpack.c.l.b16 %v21
  %v28 = vunpack.c.l.b16 %v22
  %v29 = vpack.c.b16 %v28, %v27
  %v32 = vunpack.c.l.b16 %v23
  %v33 = vunpack.c.l.b16 %v24
  %v34 = vpack.c.b16 %v33, %v32
  %vm36 = vcmask 130048
  %v38 = vsel %vm36, %v29, 0
  %40 = vmatprep.subr.bf16.mxu0 0
  %41 = vmatpush1.bf16.msra.mxu0 0
  %42 = vmatprep.subr.bf16.mxu0 0
  %43 = vmatpush1.bf16.msra.mxu0 0
  %44 = vmatprep.subr.bf16.mxu0 0
  %45 = vmatpush1.bf16.msra.mxu0 0
  %46 = vmatprep.subr.bf16.mxu0 0
  %47 = vmatpush1.bf16.msra.mxu0 0
  %48 = vmatprep.subr.bf16.mxu0 0
  %49 = vmatpush1.bf16.msra.mxu0 0
  %50 = vmatprep.subr.bf16.mxu0 0
  %51 = vmatpush1.bf16.msra.mxu0 0
  %52 = vmatprep.subr.bf16.mxu0 0
  %53 = vmatpush1.bf16.msra.mxu0 0
  %54 = vmatprep.subr.bf16.mxu0 0
  %55 = vmatpush1.bf16.msra.mxu0 %v34
  %56 = vmatprep.subr.bf16.mxu0 0
  %57 = vmatpush2.bf16.msra.mxu0 0
  %58 = vmatprep.subr.bf16.mxu0 0
  %59 = vmatpush2.bf16.msra.mxu0 0
  %60 = vmatprep.subr.bf16.mxu0 0
  %61 = vmatpush2.bf16.msra.mxu0 0
  %62 = vmatprep.subr.bf16.mxu0 0
  %63 = vmatpush2.bf16.msra.mxu0 0
  %64 = vmatprep.subr.bf16.mxu0 0
  %65 = vmatpush2.bf16.msra.mxu0 0
  %66 = vmatprep.subr.bf16.mxu0 0
  %67 = vmatpush2.bf16.msra.mxu0 0
  %68 = vmatprep.subr.bf16.mxu0 0
  %69 = vmatpush2.bf16.msra.mxu0 0
  %70 = vmatprep.subr.bf16.mxu0 0
  %71 = vmatpush2.bf16.msra.mxu0 0
  %72 = vmatprep.mubr.bf16.mxu0 0
  %73 = vmatmul.mubr.bf16.gmra.mxu0 %v38
  %v74 = vpop.f32.mrf.mxu0
  %v75 = vadd.f32 0.0, %v74
  %v76 = vpop.f32.mrf.mxu0
  %v77 = vpop.f32.mrf.mxu0
  %v78 = vadd.f32 0.0, %v77
  %v79 = vpop.f32.mrf.mxu0
  %80 = vdwg.mxu0
  %v81 = vadd.f32 %v19, %v75
  %v82 = vadd.f32 %v20, %v78
  %vm83 = vcmask 31744
  %84 = vst.msk [vmem:[#allocation2] sm:$0xff] %vm83, %v81
  %85 = vst.msk [vmem:[#allocation2 + $0x8] sm:$0xff] %vm83, %v82
  // Predicated region
  $region14: #{tpu_custom_call.1} parent=0 // pred_check
    %p86 = pneg %p12
  $region15: #{tpu_custom_call.1} parent=0 // pred_check_branch
    %88 = sbr.rel (%p86) target = $region17
  $region16: #{tpu_custom_call.1} parent=0 // pred_region
    %v89 = vld [vmem:[#allocation2] sm:$0xff]
    %v90 = vld [vmem:[#allocation2 + $0x8] sm:$0xff]
    %v91 = vpack.c.bf16 %v90, %v89
    %v93 = vunpack.c.l.b16 %v91
    %v94 = vunpack.c.h.b16 %v91
    %v95 = vpack.c.b16 %v93, %v93
    %v96 = vpack.c.b16 %v94, %v94
    %vm99 = vcmask 27648
    %100 = vst.msk [vmem:[%s2] sm:$0xf] %vm99, %v95
    %101 = vst.msk [vmem:[%s2 + $0x4] sm:$0xf] %vm99, %v96
  $region17: #{tpu_custom_call.1} parent=0 // pred_fallthru
    _
  // Predicated region
  $region18: #{tpu_custom_call.1} parent=0 // pred_check
    _
  $region19: #{tpu_custom_call.1} parent=0 // pred_check_branch
    %103 = sbr.rel (0) target = $region21
  $region20: #{tpu_custom_call.1} parent=0 // pred_region
    _
  $region21: #{tpu_custom_call.1} parent=0 // pred_fallthru
    _
  // Predicated region
  $region22: #{tpu_custom_call.1} parent=0 // pred_check
    _
  $region23: #{tpu_custom_call.1} parent=0 // pred_check_branch
    %105 = sbr.rel (0) target = $region25
  $region24: #{tpu_custom_call.1} parent=0 // pred_region
    _
  $region25: #{tpu_custom_call.1} parent=0 // pred_fallthru
    _

</llo_original>
